<compile_context>
chip_gen: v7x
topology: tpu7x:2x2x1
jax: 0.10.0
libtpu: 0.0.40
codegen_flags: <defaults>
</compile_context>

<pallas_src>
import functools

import jax
import jax.numpy as jnp
from jax import lax
from jax.experimental import pallas as pl
from jax.experimental.pallas import tpu as pltpu

LEAKY_SLOPE = 0.01  # torch.nn.LeakyReLU default negative_slope


def _round_up(x: int, m: int) -> int:
    return ((x + m - 1) // m) * m


def _make_mlp_kernel(n_layers: int, compute_dtype):
    """Fused feature-major MLP kernel for `n_layers` Linear layers."""

    def kernel(x_ref, *refs):
        # refs = (w0, b0, w1, b1, ..., w_{n-1}, b_{n-1}, out)
        out_ref = refs[-1]
        params = refs[:-1]

        # x tile: (TB, input_dim) f32 straight from HBM; cast on-tile (not in wrapper).
        x = x_ref[...].astype(compute_dtype)

        h = None  # feature-major activations: (features_i, TB), batch on lanes
        for i in range(n_layers):
            w = params[2 * i][...]        # (out_i, in_i)  torch-native layout
            b = params[2 * i + 1][...]    # (out_i, 1)     f32, broadcasts along lanes
            if i == 0:
                # Contract w's in-dim against x's feature dim: (out0, in) x (TB, in)
                # -> (out0, TB). Avoids materializing an explicit transpose of x.
                acc = lax.dot_general(
                    w, x, (((1,), (1,)), ((), ())),
                    preferred_element_type=jnp.float32)
            else:
                acc = jnp.dot(w, h, preferred_element_type=jnp.float32)
            acc = acc + b
            if i + 1 < n_layers:
                # LeakyReLU(0.01): single VALU op (valid since slope < 1).
                h = jnp.maximum(acc, LEAKY_SLOPE * acc)
                # Dropout(0.3): identity in eval mode.
                # TODO(synk): training-mode dropout (pltpu.prng_random_bits mask) not emitted.
            else:
                # Exact sigmoid (exp rides the EUP slot); output is only (1, TB).
                h = 1.0 / (1.0 + jnp.exp(-acc))
        out_ref[...] = h.astype(out_ref.dtype)  # lane-dense (1, TB) store

    return kernel


@functools.partial(jax.jit, static_argnames=("block_b", "compute_dtype"))
def discriminator_forward(x, weights, biases, *, block_b=8192,
                          compute_dtype=jnp.float32):
    """Runs the fused Discriminator MLP (eval-mode dropout).

    Args:
      x:             (B, input_dim) float32
      weights:       list of (out_i, in_i) float32 arrays (torch-native nn.Linear weight)
      biases:        list of (out_i,) float32 arrays (torch-native nn.Linear bias)
      block_b:       max batch-tile rows per grid step
      compute_dtype: dtype of the MXU operands (x tile / weights); accumulation is f32
    Returns:
      (B, 1) float32 in (0, 1)
    """
    n_layers = len(weights)
    B, input_dim = x.shape

    # Batch tile: batch rides the lane axis of activations / output, so keep it a
    # multiple of 128 for large B, and cap at ~B/2 so v7x's 2 TCs both get grid steps.
    if B < 256:
        tb = B  # single full-extent tile (always layout-legal)
    else:
        tb = min(block_b, _round_up(pl.cdiv(B, 2), 128))
        tb = max(128, (tb // 128) * 128)
    grid = (pl.cdiv(B, tb),)  # ragged last tile handled by Pallas (no jnp.pad copy)

    # Weights are tiny and VMEM-resident (fetched once); biases stay f32 and are
    # reshaped to (out_i, 1) so they broadcast along the lane (batch) axis.
    flat_params = []
    for w, b in zip(weights, biases):
        flat_params.append(w.astype(compute_dtype))
        flat_params.append(b.reshape(-1, 1).astype(jnp.float32))

    kernel = _make_mlp_kernel(n_layers, compute_dtype)

    x_spec = pl.BlockSpec((tb, input_dim), lambda i: (i, 0))
    out_spec = pl.BlockSpec((1, tb), lambda i: (0, i))  # lane-dense output slab
    param_specs = []
    for w, b in zip(weights, biases):
        param_specs.append(pl.BlockSpec(w.shape, lambda i: (0, 0)))
        param_specs.append(pl.BlockSpec((w.shape[0], 1), lambda i: (0, 0)))

    out = pl.pallas_call(
        kernel,
        out_shape=jax.ShapeDtypeStruct((1, B), jnp.float32),
        grid=grid,
        in_specs=[x_spec] + param_specs,
        out_specs=out_spec,
        compiler_params=pltpu.CompilerParams(
            dimension_semantics=("parallel",),  # megacore sharding on v7x
        ),
    )(x, *flat_params)

    # (1, B) row-major has the same linear order as (B, 1): cheap reshape.
    return out.reshape(B, 1)


def _init_params(key, layer_sizes):
    """Deterministic torch-native Linear params: U(-1/sqrt(fan_in), 1/sqrt(fan_in))."""
    weights, biases = [], []
    for fan_in, fan_out in zip(layer_sizes[:-1], layer_sizes[1:]):
        kw, kb, key = jax.random.split(key, 3)
        bound = 1.0 / jnp.sqrt(fan_in)
        w = jax.random.uniform(kw, (fan_out, fan_in), jnp.float32, -bound, bound)
        b = jax.random.uniform(kb, (fan_out,), jnp.float32, -bound, bound)
        weights.append(w)
        biases.append(b)
    return weights, biases


def _reference_forward(x, weights, biases):
    """Pure-JAX f32 reference of the same forward pass (eval-mode dropout)."""
    h = x
    n = len(weights)
    for i, (w, b) in enumerate(zip(weights, biases)):
        h = h @ w.T + b
        if i + 1 < n:
            h = jnp.where(h > 0, h, LEAKY_SLOPE * h)
        else:
            h = 1.0 / (1.0 + jnp.exp(-h))
    return h


if __name__ == "__main__":
    # Discriminator(input_dim=32, out_dim=1, discriminator_layersizes=[64, 32])
    input_dim = 32
    discriminator_layersizes = [64, 32]
    out_dim = 1
    layer_sizes = [input_dim] + discriminator_layersizes + [out_dim]

    key = jax.random.PRNGKey(0)
    kx, kx2, kp = jax.random.split(key, 3)
    weights, biases = _init_params(kp, layer_sizes)

    # 1) Small batch: single full-extent tile, f32 path.
    batch = 16
    x = jax.random.normal(kx, (batch, input_dim), jnp.float32)
    ref = _reference_forward(x, weights, biases)
    out = jax.block_until_ready(discriminator_forward(x, weights, biases))
    assert out.shape == (batch, out_dim)
    assert jnp.allclose(out, ref, atol=2e-3, rtol=2e-3), "f32 mismatch (small batch)"

    # 2) Multi-step pipelined grid with a ragged last tile (no jnp.pad copy), f32 path.
    batch2 = 300
    x2 = jax.random.normal(kx2, (batch2, input_dim), jnp.float32)
    ref2 = _reference_forward(x2, weights, biases)
    out2 = jax.block_until_ready(
        discriminator_forward(x2, weights, biases, block_b=128))
    assert out2.shape == (batch2, out_dim)
    assert jnp.allclose(out2, ref2, atol=2e-3, rtol=2e-3), "f32 mismatch (ragged grid)"

    # 3) bf16 MXU-operand path (x tile cast in-kernel, weights cast once), f32 accum.
    out_bf16 = jax.block_until_ready(
        discriminator_forward(x2, weights, biases, block_b=128,
                              compute_dtype=jnp.bfloat16))
    assert out_bf16.shape == (batch2, out_dim)
    assert jnp.allclose(out_bf16, ref2, atol=3e-2, rtol=3e-2), "bf16 mismatch"

    print("KERNEL_OK")
</pallas_src>

<mosaic_0001>
module attributes {stable_mosaic.version = 11 : i64} {
  func.func @kernel(%arg0: i32, %arg1: memref<16x32xf32, #tpu.memory_space<vmem>>, %arg2: memref<64x32xf32, #tpu.memory_space<vmem>>, %arg3: memref<64x1xf32, #tpu.memory_space<vmem>>, %arg4: memref<32x64xf32, #tpu.memory_space<vmem>>, %arg5: memref<32x1xf32, #tpu.memory_space<vmem>>, %arg6: memref<1x32xf32, #tpu.memory_space<vmem>>, %arg7: memref<1x1xf32, #tpu.memory_space<vmem>>, %arg8: memref<1x16xf32, #tpu.memory_space<vmem>>) attributes {dimension_semantics = [#tpu.dimension_semantics<parallel>], iteration_bounds = array<i64: 1>, scalar_prefetch = 0 : i64, scratch_operands = 0 : i64, tpu.core_type = #tpu.core_type<tc>, window_params = [{transform_indices = @transform_0, window_bounds = array<i64: 16, 32>}, {pipeline_mode = #tpu.pipeline_mode<synchronous>, transform_indices = @transform_1, window_bounds = array<i64: 64, 32>}, {pipeline_mode = #tpu.pipeline_mode<synchronous>, transform_indices = @transform_2, window_bounds = array<i64: 64, 1>}, {pipeline_mode = #tpu.pipeline_mode<synchronous>, transform_indices = @transform_3, window_bounds = array<i64: 32, 64>}, {pipeline_mode = #tpu.pipeline_mode<synchronous>, transform_indices = @transform_4, window_bounds = array<i64: 32, 1>}, {pipeline_mode = #tpu.pipeline_mode<synchronous>, transform_indices = @transform_5, window_bounds = array<i64: 1, 32>}, {pipeline_mode = #tpu.pipeline_mode<synchronous>, transform_indices = @transform_6, window_bounds = array<i64: 1, 1>}, {transform_indices = @transform_7, window_bounds = array<i64: 1, 16>}]} {
    %c0 = arith.constant 0 : index
    %c0_0 = arith.constant 0 : index
    %0 = vector.load %arg1[%c0, %c0_0] : memref<16x32xf32, #tpu.memory_space<vmem>>, vector<16x32xf32>
    %c0_1 = arith.constant 0 : index
    %c0_2 = arith.constant 0 : index
    %1 = vector.load %arg2[%c0_1, %c0_2] : memref<64x32xf32, #tpu.memory_space<vmem>>, vector<64x32xf32>
    %c0_3 = arith.constant 0 : index
    %c0_4 = arith.constant 0 : index
    %2 = vector.load %arg3[%c0_3, %c0_4] : memref<64x1xf32, #tpu.memory_space<vmem>>, vector<64x1xf32>
    %cst = arith.constant dense<0.000000e+00> : vector<64x16xf32>
    %3 = tpu.matmul %1, %0, %cst {dimension_numbers = #tpu.dot_dimension_numbers<[1], [1], [0], [0], [0, 0, 1, 0], [], []>} : vector<64x32xf32>, vector<16x32xf32>, vector<64x16xf32> -> vector<64x16xf32>
    %4 = vector.broadcast %2 : vector<64x1xf32> to vector<64x16xf32>
    %5 = arith.addf %3, %4 : vector<64x16xf32>
    %cst_5 = arith.constant 0.00999999977 : f32
    %6 = vector.broadcast %cst_5 : f32 to vector<64x16xf32>
    %7 = arith.mulf %6, %5 : vector<64x16xf32>
    %8 = arith.maximumf %5, %7 : vector<64x16xf32>
    %c0_6 = arith.constant 0 : index
    %c0_7 = arith.constant 0 : index
    %9 = vector.load %arg4[%c0_6, %c0_7] : memref<32x64xf32, #tpu.memory_space<vmem>>, vector<32x64xf32>
    %c0_8 = arith.constant 0 : index
    %c0_9 = arith.constant 0 : index
    %10 = vector.load %arg5[%c0_8, %c0_9] : memref<32x1xf32, #tpu.memory_space<vmem>>, vector<32x1xf32>
    %cst_10 = arith.constant dense<0.000000e+00> : vector<32x16xf32>
    %11 = tpu.matmul %9, %8, %cst_10 {dimension_numbers = #tpu.dot_dimension_numbers<[1], [0], [0], [1], [0, 0, 1, 1], [], []>} : vector<32x64xf32>, vector<64x16xf32>, vector<32x16xf32> -> vector<32x16xf32>
    %12 = vector.broadcast %10 : vector<32x1xf32> to vector<32x16xf32>
    %13 = arith.addf %11, %12 : vector<32x16xf32>
    %cst_11 = arith.constant 0.00999999977 : f32
    %14 = vector.broadcast %cst_11 : f32 to vector<32x16xf32>
    %15 = arith.mulf %14, %13 : vector<32x16xf32>
    %16 = arith.maximumf %13, %15 : vector<32x16xf32>
    %c0_12 = arith.constant 0 : index
    %c0_13 = arith.constant 0 : index
    %17 = vector.load %arg6[%c0_12, %c0_13] : memref<1x32xf32, #tpu.memory_space<vmem>>, vector<1x32xf32>
    %c0_14 = arith.constant 0 : index
    %c0_15 = arith.constant 0 : index
    %18 = vector.load %arg7[%c0_14, %c0_15] : memref<1x1xf32, #tpu.memory_space<vmem>>, vector<1x1xf32>
    %cst_16 = arith.constant dense<0.000000e+00> : vector<1x16xf32>
    %19 = tpu.matmul %17, %16, %cst_16 {dimension_numbers = #tpu.dot_dimension_numbers<[1], [0], [0], [1], [0, 0, 1, 1], [], []>} : vector<1x32xf32>, vector<32x16xf32>, vector<1x16xf32> -> vector<1x16xf32>
    %20 = vector.broadcast %18 : vector<1x1xf32> to vector<1x16xf32>
    %21 = arith.addf %19, %20 : vector<1x16xf32>
    %cst_17 = arith.constant 0.000000e+00 : f32
    %22 = vector.broadcast %cst_17 : f32 to vector<1x16xf32>
    %23 = arith.subf %22, %21 : vector<1x16xf32>
    %24 = math.exp %23 : vector<1x16xf32>
    %cst_18 = arith.constant 1.000000e+00 : f32
    %25 = vector.broadcast %cst_18 : f32 to vector<1x16xf32>
    %26 = arith.addf %25, %24 : vector<1x16xf32>
    %cst_19 = arith.constant 1.000000e+00 : f32
    %27 = vector.broadcast %cst_19 : f32 to vector<1x16xf32>
    %28 = arith.divf %27, %26 : vector<1x16xf32>
    %c0_20 = arith.constant 0 : index
    %c0_21 = arith.constant 0 : index
    %29 = vector.load %arg8[%c0_20, %c0_21] : memref<1x16xf32, #tpu.memory_space<vmem>>, vector<1x16xf32>
    tpu.vector_store %arg8[%c0_20, %c0_21], %28 {strides = array<i32>} : memref<1x16xf32, #tpu.memory_space<vmem>>, vector<1x16xf32>,
    return
  }
  func.func @transform_0(%arg0: i32) -> (i32, i32) {
    %c0_i32 = arith.constant 0 : i32
    %c0_i32_0 = arith.constant 0 : i32
    return %arg0, %c0_i32 : i32, i32
  }
  func.func @transform_1(%arg0: i32) -> (i32, i32) {
    %c0_i32 = arith.constant 0 : i32
    %c0_i32_0 = arith.constant 0 : i32
    %c0_i32_1 = arith.constant 0 : i32
    return %c0_i32, %c0_i32_0 : i32, i32
  }
  func.func @transform_2(%arg0: i32) -> (i32, i32) {
    %c0_i32 = arith.constant 0 : i32
    %c0_i32_0 = arith.constant 0 : i32
    %c0_i32_1 = arith.constant 0 : i32
    return %c0_i32, %c0_i32_0 : i32, i32
  }
  func.func @transform_3(%arg0: i32) -> (i32, i32) {
    %c0_i32 = arith.constant 0 : i32
    %c0_i32_0 = arith.constant 0 : i32
    %c0_i32_1 = arith.constant 0 : i32
    return %c0_i32, %c0_i32_0 : i32, i32
  }
  func.func @transform_4(%arg0: i32) -> (i32, i32) {
    %c0_i32 = arith.constant 0 : i32
    %c0_i32_0 = arith.constant 0 : i32
    %c0_i32_1 = arith.constant 0 : i32
    return %c0_i32, %c0_i32_0 : i32, i32
  }
  func.func @transform_5(%arg0: i32) -> (i32, i32) {
    %c0_i32 = arith.constant 0 : i32
    %c0_i32_0 = arith.constant 0 : i32
    %c0_i32_1 = arith.constant 0 : i32
    return %c0_i32, %c0_i32_0 : i32, i32
  }
  func.func @transform_6(%arg0: i32) -> (i32, i32) {
    %c0_i32 = arith.constant 0 : i32
    %c0_i32_0 = arith.constant 0 : i32
    %c0_i32_1 = arith.constant 0 : i32
    return %c0_i32, %c0_i32_0 : i32, i32
  }
  func.func @transform_7(%arg0: i32) -> (i32, i32) {
    %c0_i32 = arith.constant 0 : i32
    %c0_i32_0 = arith.constant 0 : i32
    return %c0_i32, %arg0 : i32, i32
  }
}

</mosaic_0001>

<llo_original>
// kernel: discriminator_forward.1
$region0: #{discriminator_forward.1}
  #allocation0 [shape = 'u32[]', space=smem, size = 0x4, offset = 0x4, fixed_abs, tag = 'smem constant byte address 0x4 - core index']
  #allocation1 [shape = 'u32[144,128]{1,0:T(1,128)}', space=vmem, size = 0x12000, scoped, tag = 'internal scratch']
  #allocation2 [shape = 'f32[1,1]{1,0:T(1,128)S(1)}', space=vmem, size = 0x200, scoped, tag = 'scoped memory for discriminator_forward.1']
  %s0 = inlined_call_operand.vmem [shape: f32[16,32], index: 0, kind: input, shape index: {}]
  %s1 = inlined_call_operand.vmem [shape: f32[64,32], index: 1, kind: input, shape index: {}]
  %s2 = inlined_call_operand.vmem [shape: f32[64,1], index: 2, kind: input, shape index: {}]
  %s3 = inlined_call_operand.vmem [shape: f32[32,64], index: 3, kind: input, shape index: {}]
  %s4 = inlined_call_operand.vmem [shape: f32[32,1], index: 4, kind: input, shape index: {}]
  %s5 = inlined_call_operand.vmem [shape: f32[1,32], index: 5, kind: input, shape index: {}]
  %s6 = inlined_call_operand.<no memory space> [shape: f32[1,1], index: 6, kind: input, shape index: {}]
  %s7 = inlined_call_operand.hbm [shape: f32[1,16], index: 7, kind: output, shape index: {}]
  %s8 = sld [smem:[#allocation0]]
  $region38: #{discriminator_forward.1} parent=0
    _
  %s10 = ssub.s32 1, %s8
  %s11 = scalar_select 0, %s10, %s8
  %v12 = vstv %s6
  %13 = vst [vmem:[#allocation2] sm:$0x1] %v12
  $region1: #{discriminator_forward.1} parent=0
    #allocation3 [shape = 'u8[512]{0}', space=vmem, size = 0x400, scoped, tag = 'output window, operand 0, single buffered']
    #allocation4 [shape = 's32[1]{0}', space=sflag, size = 0x4, scoped, tag = 'scoped memory for discriminator_forward.1']
    %14 = vsyncpa [#allocation4], 0
    // Predicated region
    $region2: #{discriminator_forward.1} parent=1 // pred_check
      _
    $region3: #{discriminator_forward.1} parent=1 // pred_check_branch
      %16 = sbr.rel (0) target = $region5
    $region4: #{discriminator_forward.1} parent=1 // pred_region
      _
    $region5: #{discriminator_forward.1} parent=1 // pred_fallthru
      _
    // Predicated region
    $region6: #{discriminator_forward.1} parent=1 // pred_check
      _
    $region7: #{discriminator_forward.1} parent=1 // pred_check_branch
      %18 = sbr.rel (0) target = $region9
    $region8: #{discriminator_forward.1} parent=1 // pred_region
      _
    $region9: #{discriminator_forward.1} parent=1 // pred_fallthru
      _
    // Predicated region
    $region10: #{discriminator_forward.1} parent=1 // pred_check
      _
    $region11: #{discriminator_forward.1} parent=1 // pred_check_branch
      %20 = sbr.rel (0) target = $region13
    $region12: #{discriminator_forward.1} parent=1 // pred_region
      _
    $region13: #{discriminator_forward.1} parent=1 // pred_fallthru
      _
    // Predicated region
    $region14: #{discriminator_forward.1} parent=1 // pred_check
      _
    $region15: #{discriminator_forward.1} parent=1 // pred_check_branch
      %22 = sbr.rel (0) target = $region17
    $region16: #{discriminator_forward.1} parent=1 // pred_region
      _
    $region17: #{discriminator_forward.1} parent=1 // pred_fallthru
      _
    // Predicated region
    $region18: #{discriminator_forward.1} parent=1 // pred_check
      _
    $region19: #{discriminator_forward.1} parent=1 // pred_check_branch
      %24 = sbr.rel (0) target = $region21
    $region20: #{discriminator_forward.1} parent=1 // pred_region
      _
    $region21: #{discriminator_forward.1} parent=1 // pred_fallthru
      _
    // Predicated region
    $region22: #{discriminator_forward.1} parent=1 // pred_check
      _
    $region23: #{discriminator_forward.1} parent=1 // pred_check_branch
      %26 = sbr.rel (0) target = $region25
    $region24: #{discriminator_forward.1} parent=1 // pred_region
      _
    $region25: #{discriminator_forward.1} parent=1 // pred_fallthru
      _
    // Predicated region
    $region26: #{discriminator_forward.1} parent=1 // pred_check
      _
    $region27: #{discriminator_forward.1} parent=1 // pred_check_branch
      %28 = sbr.rel (0) target = $region29
    $region28: #{discriminator_forward.1} parent=1 // pred_region
      _
    $region29: #{discriminator_forward.1} parent=1 // pred_fallthru
      _
    %v29 = vld [vmem:[%s0] sm:$0xff]
    %v30 = vld [vmem:[%s0 + $0x8] sm:$0xff]
    %v31 = vld [vmem:[%s1] sm:$0xff]
    %v32 = vld [vmem:[%s1 + $0x8] sm:$0xff]
    %v33 = vld [vmem:[%s1 + $0x10] sm:$0xff]
    %v34 = vld [vmem:[%s1 + $0x18] sm:$0xff]
    %v35 = vld [vmem:[%s1 + $0x20] sm:$0xff]
    %v36 = vld [vmem:[%s1 + $0x28] sm:$0xff]
    %v37 = vld [vmem:[%s1 + $0x30] sm:$0xff]
    %v38 = vld [vmem:[%s1 + $0x38] sm:$0xff]
    %v39 = vld [vmem:[%s2] sm:$0xff]
    %v40 = vld [vmem:[%s2 + $0x8] sm:$0xff]
    %v41 = vld [vmem:[%s2 + $0x10] sm:$0xff]
    %v42 = vld [vmem:[%s2 + $0x18] sm:$0xff]
    %v43 = vld [vmem:[%s2 + $0x20] sm:$0xff]
    %v44 = vld [vmem:[%s2 + $0x28] sm:$0xff]
    %v45 = vld [vmem:[%s2 + $0x30] sm:$0xff]
    %v46 = vld [vmem:[%s2 + $0x38] sm:$0xff]
    %48 = vset.pattern.permute.xlu0 0
    %49 = vperm.xlu0 %48, %v39
    %v50 = vpop.permute.xlu0 %49
    %53 = vset.pattern.permute.xlu0 0
    %54 = vperm.xlu0 %53, %v40
    %v55 = vpop.permute.xlu0 %54
    %58 = vset.pattern.permute.xlu0 0
    %59 = vperm.xlu0 %58, %v41
    %v60 = vpop.permute.xlu0 %59
    %63 = vset.pattern.permute.xlu0 0
    %64 = vperm.xlu0 %63, %v42
    %v65 = vpop.permute.xlu0 %64
    %68 = vset.pattern.permute.xlu0 0
    %69 = vperm.xlu0 %68, %v43
    %v70 = vpop.permute.xlu0 %69
    %73 = vset.pattern.permute.xlu0 0
    %74 = vperm.xlu0 %73, %v44
    %v75 = vpop.permute.xlu0 %74
    %78 = vset.pattern.permute.xlu0 0
    %79 = vperm.xlu0 %78, %v45
    %v80 = vpop.permute.xlu0 %79
    %83 = vset.pattern.permute.xlu0 0
    %84 = vperm.xlu0 %83, %v46
    %v85 = vpop.permute.xlu0 %84
    %vm87 = vcmask 261120
    %v89 = vsel %vm87, %v31, 0
    %v92 = vsel %vm87, %v32, 0
    %v95 = vsel %vm87, %v33, 0
    %v98 = vsel %vm87, %v34, 0
    %v101 = vsel %vm87, %v35, 0
    %v104 = vsel %vm87, %v36, 0
    %v107 = vsel %vm87, %v37, 0
    %v110 = vsel %vm87, %v38, 0
    %v113 = vsel %vm87, %v29, 0
    %v116 = vsel %vm87, %v30, 0
    %118 = vmatprep.subr.mxu0 0.0
    %119 = vmatpush1.xpose.msra.mxu0 %v113
    %120 = vmatprep.subr.mxu0 0.0
    %121 = vmatpush1.xpose.msra.mxu0 %v116
    %122 = vmatprep.subr.mxu0 0.0
    %123 = vmatpush1.xpose.msra.mxu0 0.0
    %124 = vmatprep.subr.mxu0 0.0
    %125 = vmatpush1.xpose.msra.mxu0 0.0
    %126 = vmatprep.subr.mxu0 0.0
    %127 = vmatpush1.xpose.msra.mxu0 0.0
    %128 = vmatprep.subr.mxu0 0.0
    %129 = vmatpush1.xpose.msra.mxu0 0.0
    %130 = vmatprep.subr.mxu0 0.0
    %131 = vmatpush1.xpose.msra.mxu0 0.0
    %132 = vmatprep.subr.mxu0 0.0
    %133 = vmatpush1.xpose.msra.mxu0 0.0
    %134 = vmatprep.subr.mxu0 0.0
    %135 = vmatpush1.xpose.msra.mxu0 0.0
    %136 = vmatprep.subr.mxu0 0.0
    %137 = vmatpush1.xpose.msra.mxu0 0.0
    %138 = vmatprep.subr.mxu0 0.0
    %139 = vmatpush1.xpose.msra.mxu0 0.0
    %140 = vmatprep.subr.mxu0 0.0
    %141 = vmatpush1.xpose.msra.mxu0 0.0
    %142 = vmatprep.subr.mxu0 0.0
    %143 = vmatpush1.xpose.msra.mxu0 0.0
    %144 = vmatprep.subr.mxu0 0.0
    %145 = vmatpush1.xpose.msra.mxu0 0.0
    %146 = vmatprep.subr.mxu0 0.0
    %147 = vmatpush1.xpose.msra.mxu0 0.0
    %148 = vmatprep.subr.mxu0 0.0
    %149 = vmatpush1.xpose.msra.mxu0 0.0
    %150 = vmatprep.subr.mxu0 0.0
    %151 = vmatpush1.xpose.msra.mxu0 0.0
    %152 = vmatprep.subr.mxu0 0.0
    %153 = vmatpush1.xpose.msra.mxu0 0.0
    %154 = vmatprep.subr.mxu0 0.0
    %155 = vmatpush1.xpose.msra.mxu0 0.0
    %156 = vmatprep.subr.mxu0 0.0
    %157 = vmatpush1.xpose.msra.mxu0 0.0
    %158 = vmatprep.subr.mxu0 0.0
    %159 = vmatpush1.xpose.msra.mxu0 0.0
    %160 = vmatprep.subr.mxu0 0.0
    %161 = vmatpush1.xpose.msra.mxu0 0.0
    %162 = vmatprep.subr.mxu0 0.0
    %163 = vmatpush1.xpose.msra.mxu0 0.0
    %164 = vmatprep.subr.mxu0 0.0
    %165 = vmatpush1.xpose.msra.mxu0 0.0
    %166 = vmatprep.subr.mxu0 0.0
    %167 = vmatpush1.xpose.msra.mxu0 0.0
    %168 = vmatprep.subr.mxu0 0.0
    %169 = vmatpush1.xpose.msra.mxu0 0.0
    %170 = vmatprep.subr.mxu0 0.0
    %171 = vmatpush1.xpose.msra.mxu0 0.0
    %172 = vmatprep.subr.mxu0 0.0
    %173 = vmatpush1.xpose.msra.mxu0 0.0
    %174 = vmatprep.subr.mxu0 0.0
    %175 = vmatpush1.xpose.msra.mxu0 0.0
    %176 = vmatprep.subr.mxu0 0.0
    %177 = vmatpush1.xpose.msra.mxu0 0.0
    %178 = vmatprep.subr.mxu0 0.0
    %179 = vmatpush1.xpose.msra.mxu0 0.0
    %180 = vmatprep.subr.mxu0 0.0
    %181 = vmatpush1.xpose.msra.mxu0 0.0
    %182 = vmatprep.mubr.f32.mxu0 0.0
    %183 = vmatmul.mubr.f32.gmra.mrb[0].mxu0 %v89
    %v184 = vpop.f32.mrb[0].mxu0
    %v185 = vadd.f32 %v50, %v184
    %v186 = vpop.f32.mrb[0].mxu0
    %187 = vmatprep.mubr.f32.mxu0 0.0
    %188 = vmatmul.mubr.f32.gmra.mrb[0].mxu0 %v92
    %v189 = vpop.f32.mrb[0].mxu0
    %v190 = vadd.f32 %v55, %v189
    %v191 = vpop.f32.mrb[0].mxu0
    %192 = vmatprep.mubr.f32.mxu0 0.0
    %193 = vmatmul.mubr.f32.gmra.mrb[0].mxu0 %v95
    %v194 = vpop.f32.mrb[0].mxu0
    %v195 = vadd.f32 %v60, %v194
    %v196 = vpop.f32.mrb[0].mxu0
    %197 = vmatprep.mubr.f32.mxu0 0.0
    %198 = vmatmul.mubr.f32.gmra.mrb[0].mxu0 %v98
    %v199 = vpop.f32.mrb[0].mxu0
    %v200 = vadd.f32 %v65, %v199
    %v201 = vpop.f32.mrb[0].mxu0
    %202 = vmatprep.mubr.f32.mxu0 0.0
    %203 = vmatmul.mubr.f32.gmra.mrb[0].mxu0 %v101
    %v204 = vpop.f32.mrb[0].mxu0
    %v205 = vadd.f32 %v70, %v204
    %v206 = vpop.f32.mrb[0].mxu0
    %207 = vmatprep.mubr.f32.mxu0 0.0
    %208 = vmatmul.mubr.f32.gmra.mrb[0].mxu0 %v104
    %v209 = vpop.f32.mrb[0].mxu0
    %v210 = vadd.f32 %v75, %v209
    %v211 = vpop.f32.mrb[0].mxu0
    %212 = vmatprep.mubr.f32.mxu0 0.0
    %213 = vmatmul.mubr.f32.gmra.mrb[0].mxu0 %v107
    %v214 = vpop.f32.mrb[0].mxu0
    %v215 = vadd.f32 %v80, %v214
    %v216 = vpop.f32.mrb[0].mxu0
    %217 = vmatprep.mubr.f32.mxu0 0.0
    %218 = vmatmul.mubr.f32.gmra.mrb[0].mxu0 %v110
    %v219 = vpop.f32.mrb[0].mxu0
    %v220 = vadd.f32 %v85, %v219
    %v221 = vpop.f32.mrb[0].mxu0
    %222 = vdwg.mxu0
    %v223 = vmul.f32 %v185, 0.01
    %v224 = vmul.f32 %v190, 0.01
    %v225 = vmul.f32 %v195, 0.01
    %v226 = vmul.f32 %v200, 0.01
    %v227 = vmul.f32 %v205, 0.01
    %v228 = vmul.f32 %v210, 0.01
    %v229 = vmul.f32 %v215, 0.01
    %v230 = vmul.f32 %v220, 0.01
    %v231 = vmax.f32 %v185, %v223
    %v232 = vmax.f32 %v190, %v224
    %v233 = vmax.f32 %v195, %v225
    %v234 = vmax.f32 %v200, %v226
    %v235 = vmax.f32 %v205, %v227
    %v236 = vmax.f32 %v210, %v228
    %v237 = vmax.f32 %v215, %v229
    %v238 = vmax.f32 %v220, %v230
    %v239 = vld [vmem:[%s3] sm:$0xff]
    %v240 = vld [vmem:[%s3 + $0x8] sm:$0xff]
    %v241 = vld [vmem:[%s3 + $0x10] sm:$0xff]
    %v242 = vld [vmem:[%s3 + $0x18] sm:$0xff]
    %v243 = vld [vmem:[%s4] sm:$0xff]
    %v244 = vld [vmem:[%s4 + $0x8] sm:$0xff]
    %v245 = vld [vmem:[%s4 + $0x10] sm:$0xff]
    %v246 = vld [vmem:[%s4 + $0x18] sm:$0xff]
    %248 = vset.pattern.permute.xlu0 0
    %249 = vperm.xlu0 %248, %v243
    %v250 = vpop.permute.xlu0 %249
    %253 = vset.pattern.permute.xlu0 0
    %254 = vperm.xlu0 %253, %v244
    %v255 = vpop.permute.xlu0 %254
    %258 = vset.pattern.permute.xlu0 0
    %259 = vperm.xlu0 %258, %v245
    %v260 = vpop.permute.xlu0 %259
    %263 = vset.pattern.permute.xlu0 0
    %264 = vperm.xlu0 %263, %v246
    %v265 = vpop.permute.xlu0 %264
    %vm267 = vcmask 523264
    %v269 = vsel %vm267, %v239, 0
    %v272 = vsel %vm267, %v240, 0
    %v275 = vsel %vm267, %v241, 0
    %v278 = vsel %vm267, %v242, 0
    %280 = vmatprep.subr.mxu0 0.0
    %281 = vmatpush1.msra.mxu0 %v231
    %282 = vmatprep.subr.mxu0 0.0
    %283 = vmatpush1.msra.mxu0 %v232
    %284 = vmatprep.subr.mxu0 0.0
    %285 = vmatpush1.msra.mxu0 %v233
    %286 = vmatprep.subr.mxu0 0.0
    %287 = vmatpush1.msra.mxu0 %v234
    %288 = vmatprep.subr.mxu0 0.0
    %289 = vmatpush1.msra.mxu0 %v235
    %290 = vmatprep.subr.mxu0 0.0
    %291 = vmatpush1.msra.mxu0 %v236
    %292 = vmatprep.subr.mxu0 0.0
    %293 = vmatpush1.msra.mxu0 %v237
    %294 = vmatprep.subr.mxu0 0.0
    %295 = vmatpush1.msra.mxu0 %v238
    %296 = vmatprep.subr.mxu0 0.0
    %297 = vmatpush1.msra.mxu0 0.0
    %298 = vmatprep.subr.mxu0 0.0
    %299 = vmatpush1.msra.mxu0 0.0
    %300 = vmatprep.subr.mxu0 0.0
    %301 = vmatpush1.msra.mxu0 0.0
    %302 = vmatprep.subr.mxu0 0.0
    %303 = vmatpush1.msra.mxu0 0.0
    %304 = vmatprep.subr.mxu0 0.0
    %305 = vmatpush1.msra.mxu0 0.0
    %306 = vmatprep.subr.mxu0 0.0
    %307 = vmatpush1.msra.mxu0 0.0
    %308 = vmatprep.subr.mxu0 0.0
    %309 = vmatpush1.msra.mxu0 0.0
    %310 = vmatprep.subr.mxu0 0.0
    %311 = vmatpush1.msra.mxu0 0.0
    %312 = vmatprep.subr.mxu0 0.0
    %313 = vmatpush1.msra.mxu0 0.0
    %314 = vmatprep.subr.mxu0 0.0
    %315 = vmatpush1.msra.mxu0 0.0
    %316 = vmatprep.subr.mxu0 0.0
    %317 = vmatpush1.msra.mxu0 0.0
    %318 = vmatprep.subr.mxu0 0.0
    %319 = vmatpush1.msra.mxu0 0.0
    %320 = vmatprep.subr.mxu0 0.0
    %321 = vmatpush1.msra.mxu0 0.0
    %322 = vmatprep.subr.mxu0 0.0
    %323 = vmatpush1.msra.mxu0 0.0
    %324 = vmatprep.subr.mxu0 0.0
    %325 = vmatpush1.msra.mxu0 0.0
    %326 = vmatprep.subr.mxu0 0.0
    %327 = vmatpush1.msra.mxu0 0.0
    %328 = vmatprep.subr.mxu0 0.0
    %329 = vmatpush1.msra.mxu0 0.0
    %330 = vmatprep.subr.mxu0 0.0
    %331 = vmatpush1.msra.mxu0 0.0
    %332 = vmatprep.subr.mxu0 0.0
    %333 = vmatpush1.msra.mxu0 0.0
    %334 = vmatprep.subr.mxu0 0.0
    %335 = vmatpush1.msra.mxu0 0.0
    %336 = vmatprep.subr.mxu0 0.0
    %337 = vmatpush1.msra.mxu0 0.0
    %338 = vmatprep.subr.mxu0 0.0
    %339 = vmatpush1.msra.mxu0 0.0
    %340 = vmatprep.subr.mxu0 0.0
    %341 = vmatpush1.msra.mxu0 0.0
    %342 = vmatprep.subr.mxu0 0.0
    %343 = vmatpush1.msra.mxu0 0.0
    %344 = vmatprep.mubr.f32.mxu0 0.0
    %345 = vmatmul.mubr.f32.gmra.mrb[0].mxu0 %v269
    %v346 = vpop.f32.mrb[0].mxu0
    %v347 = vadd.f32 %v250, %v346
    %v348 = vpop.f32.mrb[0].mxu0
    %349 = vmatprep.mubr.f32.mxu0 0.0
    %350 = vmatmul.mubr.f32.gmra.mrb[0].mxu0 %v272
    %v351 = vpop.f32.mrb[0].mxu0
    %v352 = vadd.f32 %v255, %v351
    %v353 = vpop.f32.mrb[0].mxu0
    %354 = vmatprep.mubr.f32.mxu0 0.0
    %355 = vmatmul.mubr.f32.gmra.mrb[0].mxu0 %v275
    %v356 = vpop.f32.mrb[0].mxu0
    %v357 = vadd.f32 %v260, %v356
    %v358 = vpop.f32.mrb[0].mxu0
    %359 = vmatprep.mubr.f32.mxu0 0.0
    %360 = vmatmul.mubr.f32.gmra.mrb[0].mxu0 %v278
    %v361 = vpop.f32.mrb[0].mxu0
    %v362 = vadd.f32 %v265, %v361
    %v363 = vpop.f32.mrb[0].mxu0
    %364 = vdwg.mxu0
    %v365 = vmul.f32 %v347, 0.01
    %v366 = vmul.f32 %v352, 0.01
    %v367 = vmul.f32 %v357, 0.01
    %v368 = vmul.f32 %v362, 0.01
    %v369 = vmax.f32 %v347, %v365
    %v370 = vmax.f32 %v352, %v366
    %v371 = vmax.f32 %v357, %v367
    %v372 = vmax.f32 %v362, %v368
    %v373 = vld [vmem:[%s5] sm:$0x1]
    %v374 = vld [vmem:[#allocation2] sm:$0x1]
    %376 = vset.pattern.permute.xlu0 0
    %377 = vperm.xlu0 %376, %v374
    %v378 = vpop.permute.xlu0 %377
    %v380 = vlaneseq
    %v381 = vshrl.u32 %v380, 7
    %v382 = vsub.s32 0, %v381
    %v383 = vrot.slane %v378, %v382
    %v385 = vsel %vm87, %v373, 0
    %387 = vmatprep.subr.mxu0 0.0
    %388 = vmatpush1.msra.mxu0 %v369
    %389 = vmatprep.subr.mxu0 0.0
    %390 = vmatpush1.msra.mxu0 %v370
    %391 = vmatprep.subr.mxu0 0.0
    %392 = vmatpush1.msra.mxu0 %v371
    %393 = vmatprep.subr.mxu0 0.0
    %394 = vmatpush1.msra.mxu0 %v372
    %395 = vmatprep.subr.mxu0 0.0
    %396 = vmatpush1.msra.mxu0 0.0
    %397 = vmatprep.subr.mxu0 0.0
    %398 = vmatpush1.msra.mxu0 0.0
    %399 = vmatprep.subr.mxu0 0.0
    %400 = vmatpush1.msra.mxu0 0.0
    %401 = vmatprep.subr.mxu0 0.0
    %402 = vmatpush1.msra.mxu0 0.0
    %403 = vmatprep.subr.mxu0 0.0
    %404 = vmatpush1.msra.mxu0 0.0
    %405 = vmatprep.subr.mxu0 0.0
    %406 = vmatpush1.msra.mxu0 0.0
    %407 = vmatprep.subr.mxu0 0.0
    %408 = vmatpush1.msra.mxu0 0.0
    %409 = vmatprep.subr.mxu0 0.0
    %410 = vmatpush1.msra.mxu0 0.0
    %411 = vmatprep.subr.mxu0 0.0
    %412 = vmatpush1.msra.mxu0 0.0
    %413 = vmatprep.subr.mxu0 0.0
    %414 = vmatpush1.msra.mxu0 0.0
    %415 = vmatprep.subr.mxu0 0.0
    %416 = vmatpush1.msra.mxu0 0.0
    %417 = vmatprep.subr.mxu0 0.0
    %418 = vmatpush1.msra.mxu0 0.0
    %419 = vmatprep.subr.mxu0 0.0
    %420 = vmatpush1.msra.mxu0 0.0
    %421 = vmatprep.subr.mxu0 0.0
    %422 = vmatpush1.msra.mxu0 0.0
    %423 = vmatprep.subr.mxu0 0.0
    %424 = vmatpush1.msra.mxu0 0.0
    %425 = vmatprep.subr.mxu0 0.0
    %426 = vmatpush1.msra.mxu0 0.0
    %427 = vmatprep.subr.mxu0 0.0
    %428 = vmatpush1.msra.mxu0 0.0
    %429 = vmatprep.subr.mxu0 0.0
    %430 = vmatpush1.msra.mxu0 0.0
    %431 = vmatprep.subr.mxu0 0.0
    %432 = vmatpush1.msra.mxu0 0.0
    %433 = vmatprep.subr.mxu0 0.0
    %434 = vmatpush1.msra.mxu0 0.0
    %435 = vmatprep.subr.mxu0 0.0
    %436 = vmatpush1.msra.mxu0 0.0
    %437 = vmatprep.subr.mxu0 0.0
    %438 = vmatpush1.msra.mxu0 0.0
    %439 = vmatprep.subr.mxu0 0.0
    %440 = vmatpush1.msra.mxu0 0.0
    %441 = vmatprep.subr.mxu0 0.0
    %442 = vmatpush1.msra.mxu0 0.0
    %443 = vmatprep.subr.mxu0 0.0
    %444 = vmatpush1.msra.mxu0 0.0
    %445 = vmatprep.subr.mxu0 0.0
    %446 = vmatpush1.msra.mxu0 0.0
    %447 = vmatprep.subr.mxu0 0.0
    %448 = vmatpush1.msra.mxu0 0.0
    %449 = vmatprep.subr.mxu0 0.0
    %450 = vmatpush1.msra.mxu0 0.0
    %451 = vmatprep.mubr.f32.mxu0 0.0
    %452 = vmatmul.mubr.f32.gmra.mrb[0].mxu0 %v385
    %v453 = vpop.f32.mrb[0].mxu0
    %v454 = vadd.f32 %v383, %v453
    %v455 = vpop.f32.mrb[0].mxu0
    %456 = vdwg.mxu0
    %v457 = vsub.f32 0.0, %v454
    %v458 = vmul.f32 %v457, 1.442695
    %v459 = vpow.pop %v458
    %v460 = vadd.f32 %v459, 1.0
    %v461 = vrcp.pop %v460
    %v462 = vmul.f32 1.0, %v461
    %vm463 = vcmask 122880
    %464 = vst.msk [vmem:[#allocation3] sm:$0x1] %vm463, %v462
    // Predicated region
    $region30: #{discriminator_forward.1} parent=1 // pred_check
      _
    $region31: #{discriminator_forward.1} parent=1 // pred_check_branch
      %466 = sbr.rel (0) target = $region33
    $region32: #{discriminator_forward.1} parent=1 // pred_region
      %s468 = ssub.s32 16, 16
      %469 = vsyncadd [#allocation4], %s468
      %s471 = sshll.u32 [#allocation3], 4
      %s472 = int_to_ptr.vmem [resolvable:$true] %s471
      %474 = dma.vmem_to_hbm [thread:$0]  %s472, 16, %s7, [#allocation4]
    $region33: #{discriminator_forward.1} parent=1 // pred_fallthru
      _
    // Predicated region
    $region34: #{discriminator_forward.1} parent=1 // pred_check
      _
    $region35: #{discriminator_forward.1} parent=1 // pred_check_branch
      %476 = sbr.rel (0) target = $region37
    $region36: #{discriminator_forward.1} parent=1 // pred_region
      %477 = dma.done [#allocation4], 16
    $region37: #{discriminator_forward.1} parent=1 // pred_fallthru
      _
    %478 = vsyncpa [#allocation4], 1

</llo_original>
